<compile_context>
chip_gen: v7x
topology: tpu7x:2x2x1
jax: 0.10.0
libtpu: 0.0.40
codegen_flags: <defaults>
</compile_context>

<pallas_src>
import math

import jax
import jax.numpy as jnp
from jax.experimental import pallas as pl
from jax.experimental.pallas import tpu as pltpu


def _round_up(v, m):
    return (v + m - 1) // m * m


def _cdiv(a, b):
    return (a + b - 1) // b


# ---------------------------------------------------------------------------
# Kernels
# ---------------------------------------------------------------------------
def _fr_kernel_resident(x_ref, wt_ref, b_ref, o_ref):
    """Whole pre-masked weight resident in VMEM: one MXU dot + fused bias store."""
    acc = jax.lax.dot_general(
        x_ref[...], wt_ref[...],
        dimension_numbers=(((1,), (0,)), ((), ())),
        preferred_element_type=jnp.float32,
    )
    o_ref[...] = (acc + b_ref[...].astype(jnp.float32)).astype(o_ref.dtype)


def _fr_kernel_ktiled(x_ref, wt_ref, b_ref, o_ref, acc_ref):
    """Fallback for very large D: K-tiled accumulation, bias folded into init."""
    k = pl.program_id(2)

    @pl.when(k == 0)
    def _():
        acc_ref[...] = jnp.broadcast_to(
            b_ref[...].astype(jnp.float32), acc_ref.shape)

    acc_ref[...] += jax.lax.dot_general(
        x_ref[...], wt_ref[...],
        dimension_numbers=(((1,), (0,)), ((), ())),
        preferred_element_type=jnp.float32,
    )

    @pl.when(k == pl.num_programs(2) - 1)
    def _():
        o_ref[...] = acc_ref[...].astype(o_ref.dtype)


# ---------------------------------------------------------------------------
# One-time parameter prep (hoist out of the per-timestep RITS loop)
# ---------------------------------------------------------------------------
def prepare_params(W, b, *, dtype=None):
    """Returns (wt, b2d): diag-masked, transposed weight [Dp, Dp] and bias
    [1, Dp], both zero-padded to a 128-lane multiple.  Do this once per
    parameter update.  On v6e/v7x pass dtype=jnp.bfloat16 to halve HBM bytes
    (kernel accumulates in f32 regardless)."""
    D = W.shape[0]
    dt = W.dtype if dtype is None else dtype
    # Mask is symmetric, so masking commutes with the transpose.
    wt = (W * (jnp.ones((D, D), W.dtype) - jnp.eye(D, dtype=W.dtype))).T
    wt = wt.astype(dt)
    b2d = b.reshape(1, D).astype(dt)
    Dp = _round_up(D, 128)
    if Dp != D:
        wt = jnp.pad(wt, ((0, Dp - D), (0, Dp - D)))
        b2d = jnp.pad(b2d, ((0, 0), (0, Dp - D)))
    return wt, b2d


# ---------------------------------------------------------------------------
# Hot path: inputs already lane-padded; keep them that way across the RITS
# time loop and flatten (batch x timesteps) into the M axis where possible.
# ---------------------------------------------------------------------------
def feature_regression_premasked(xp, wt, b2d):
    """xp: (Bp, Dp) with Bp % 8 == 0; wt: (Dp, Dp) from prepare_params;
    b2d: (1, Dp).  Returns (Bp, Dp)."""
    Bp, Dp = xp.shape
    assert Bp % 8 == 0
    assert wt.shape == (Dp, Dp) and b2d.shape == (1, Dp)
    itemsize = jnp.dtype(xp.dtype).itemsize

    # M tiling: big tiles (HBM-streaming bound) without over-padding Bp; for
    # Bp > 512 this automatically yields >=2 "parallel" programs (v7x 2 TCs).
    nm = _cdiv(Bp, 512)
    tm = _round_up(_cdiv(Bp, nm), 8)
    grid_m = _cdiv(Bp, tm)

    cost = pl.CostEstimate(
        flops=2 * Bp * Dp * Dp,
        transcendentals=0,
        bytes_accessed=(2 * Bp * Dp + Dp * Dp + Dp) * itemsize,
    )

    # Keep the whole weight resident whenever it (plus double-buffered x/out
    # tiles) comfortably fits the scoped-VMEM default on every generation.
    resident_bytes = (2 * Dp * Dp + 4 * tm * Dp + 2 * Dp) * itemsize
    if resident_bytes <= (24 << 20):
        return pl.pallas_call(
            _fr_kernel_resident,
            out_shape=jax.ShapeDtypeStruct((Bp, Dp), xp.dtype),
            grid_spec=pltpu.PrefetchScalarGridSpec(
                num_scalar_prefetch=0,
                grid=(grid_m,),
                in_specs=[
                    pl.BlockSpec((tm, Dp), lambda i: (i, 0)),   # x tile
                    pl.BlockSpec((Dp, Dp), lambda i: (0, 0)),   # resident Wt
                    pl.BlockSpec((1, Dp), lambda i: (0, 0)),    # resident bias
                ],
                out_specs=pl.BlockSpec((tm, Dp), lambda i: (i, 0)),
            ),
            compiler_params=pltpu.CompilerParams(
                dimension_semantics=("parallel",),
            ),
            cost_estimate=cost,
        )(xp, wt, b2d)

    # Fallback: D too large for a resident weight -> classic (M, N, K) tiling.
    tn = tk = next(t for t in (512, 256, 128) if Dp % t == 0)
    return pl.pallas_call(
        _fr_kernel_ktiled,
        out_shape=jax.ShapeDtypeStruct((Bp, Dp), xp.dtype),
        grid_spec=pltpu.PrefetchScalarGridSpec(
            num_scalar_prefetch=0,
            grid=(grid_m, Dp // tn, Dp // tk),
            in_specs=[
                pl.BlockSpec((tm, tk), lambda i, j, k: (i, k)),   # x
                pl.BlockSpec((tk, tn), lambda i, j, k: (k, j)),   # Wt ([K,N])
                pl.BlockSpec((1, tn), lambda i, j, k: (0, j)),    # bias
            ],
            out_specs=pl.BlockSpec((tm, tn), lambda i, j, k: (i, j)),
            scratch_shapes=[pltpu.VMEM((tm, tn), jnp.float32)],
        ),
        compiler_params=pltpu.CompilerParams(
            dimension_semantics=("parallel", "parallel", "arbitrary"),
        ),
        cost_estimate=cost,
    )(xp, wt, b2d)


# ---------------------------------------------------------------------------
# Convenience wrapper matching the PyTorch module's forward signature.
# ---------------------------------------------------------------------------
def feature_regression(x, W, b, *, dtype=None):
    """In a real RITS loop, hoist prepare_params() and the x lane-padding out
    of the per-timestep call (and flatten timesteps into the batch dim), then
    call feature_regression_premasked directly."""
    B, D = x.shape
    wt, b2d = prepare_params(W, b, dtype=dtype)
    Dp = wt.shape[0]
    Bp = _round_up(B, 8)
    xp = x.astype(wt.dtype)
    if (Bp, Dp) != (B, D):
        xp = jnp.pad(xp, ((0, Bp - B), (0, Dp - D)))
    out = feature_regression_premasked(xp, wt, b2d)
    if (Bp, Dp) != (B, D):
        out = out[:B, :D]
    return out.astype(x.dtype)


def feature_regression_ref(x, W, b):
    D = W.shape[0]
    m = jnp.ones((D, D), x.dtype) - jnp.eye(D, dtype=x.dtype)
    return x @ (W * m).T + b


if __name__ == "__main__":
    key = jax.random.PRNGKey(0)
    B, D = 8, 32   # batch=8, input_size=32 (small shapes per module spec)
    T = 4          # a few "timesteps" to exercise the batched-M hot path

    kx, kw, kb = jax.random.split(key, 3)
    # Deterministic init mirroring reset_parameters(): uniform(-stdv, stdv)
    stdv = 1.0 / math.sqrt(D)
    W = jax.random.uniform(kw, (D, D), jnp.float32, minval=-stdv, maxval=stdv)
    b = jax.random.uniform(kb, (D,), jnp.float32, minval=-stdv, maxval=stdv)
    x = jax.random.normal(kx, (B, D), jnp.float32)

    # --- module-signature wrapper -----------------------------------------
    z = feature_regression(x, W, b)
    jax.block_until_ready(z)
    z_ref = feature_regression_ref(x, W, b)
    assert z.shape == (B, D)
    assert jnp.allclose(z, z_ref, atol=1e-5, rtol=1e-5), "mismatch vs reference"

    # --- hot-path usage: params prepped once, x kept lane-padded, timesteps
    #     flattened into the M dimension, one pallas_call ---------------------
    wt_p, b_p = prepare_params(W, b)
    Dp = wt_p.shape[0]
    x_seq = jax.random.normal(kx, (T, B, D), jnp.float32)
    xp = jnp.pad(x_seq.reshape(T * B, D), ((0, 0), (0, Dp - D)))  # (T*B) % 8 == 0
    z_seq = feature_regression_premasked(xp, wt_p, b_p)
    jax.block_until_ready(z_seq)
    z_seq = z_seq[:, :D].reshape(T, B, D)
    z_seq_ref = jax.vmap(lambda xt: feature_regression_ref(xt, W, b))(x_seq)
    assert jnp.allclose(z_seq, z_seq_ref, atol=1e-5, rtol=1e-5), "seq mismatch"

    print("KERNEL_OK")
</pallas_src>

<mosaic_0001>
module attributes {stable_mosaic.version = 11 : i64} {
  func.func @_fr_kernel_resident(%arg0: i32, %arg1: memref<8x128xf32, #tpu.memory_space<vmem>>, %arg2: memref<128x128xf32, #tpu.memory_space<vmem>>, %arg3: memref<1x128xf32, #tpu.memory_space<vmem>>, %arg4: memref<8x128xf32, #tpu.memory_space<vmem>>) attributes {dimension_semantics = [#tpu.dimension_semantics<parallel>], iteration_bounds = array<i64: 1>, scalar_prefetch = 0 : i64, scratch_operands = 0 : i64, tpu.core_type = #tpu.core_type<tc>, window_params = [{transform_indices = @transform_0, window_bounds = array<i64: 8, 128>}, {pipeline_mode = #tpu.pipeline_mode<synchronous>, transform_indices = @transform_1, window_bounds = array<i64: 128, 128>}, {pipeline_mode = #tpu.pipeline_mode<synchronous>, transform_indices = @transform_2, window_bounds = array<i64: 1, 128>}, {transform_indices = @transform_3, window_bounds = array<i64: 8, 128>}]} {
    %c0 = arith.constant 0 : index
    %c0_0 = arith.constant 0 : index
    %0 = vector.load %arg1[%c0, %c0_0] : memref<8x128xf32, #tpu.memory_space<vmem>>, vector<8x128xf32>
    %c0_1 = arith.constant 0 : index
    %c0_2 = arith.constant 0 : index
    %1 = vector.load %arg2[%c0_1, %c0_2] : memref<128x128xf32, #tpu.memory_space<vmem>>, vector<128x128xf32>
    %cst = arith.constant dense<0.000000e+00> : vector<8x128xf32>
    %2 = tpu.matmul %0, %1, %cst {dimension_numbers = #tpu.dot_dimension_numbers<[1], [0], [0], [1], [0, 0, 1, 1], [], []>} : vector<8x128xf32>, vector<128x128xf32>, vector<8x128xf32> -> vector<8x128xf32>
    %c0_3 = arith.constant 0 : index
    %c0_4 = arith.constant 0 : index
    %3 = vector.load %arg3[%c0_3, %c0_4] : memref<1x128xf32, #tpu.memory_space<vmem>>, vector<1x128xf32>
    %4 = vector.broadcast %3 : vector<1x128xf32> to vector<8x128xf32>
    %5 = arith.addf %2, %4 : vector<8x128xf32>
    %c0_5 = arith.constant 0 : index
    %c0_6 = arith.constant 0 : index
    %6 = vector.load %arg4[%c0_5, %c0_6] : memref<8x128xf32, #tpu.memory_space<vmem>>, vector<8x128xf32>
    tpu.vector_store %arg4[%c0_5, %c0_6], %5 {strides = array<i32>} : memref<8x128xf32, #tpu.memory_space<vmem>>, vector<8x128xf32>,
    return
  }
  func.func @transform_0(%arg0: i32) -> (i32, i32) {
    %c0_i32 = arith.constant 0 : i32
    %c0_i32_0 = arith.constant 0 : i32
    return %arg0, %c0_i32 : i32, i32
  }
  func.func @transform_1(%arg0: i32) -> (i32, i32) {
    %c0_i32 = arith.constant 0 : i32
    %c0_i32_0 = arith.constant 0 : i32
    %c0_i32_1 = arith.constant 0 : i32
    return %c0_i32, %c0_i32_0 : i32, i32
  }
  func.func @transform_2(%arg0: i32) -> (i32, i32) {
    %c0_i32 = arith.constant 0 : i32
    %c0_i32_0 = arith.constant 0 : i32
    %c0_i32_1 = arith.constant 0 : i32
    return %c0_i32, %c0_i32_0 : i32, i32
  }
  func.func @transform_3(%arg0: i32) -> (i32, i32) {
    %c0_i32 = arith.constant 0 : i32
    %c0_i32_0 = arith.constant 0 : i32
    return %arg0, %c0_i32 : i32, i32
  }
}

</mosaic_0001>

<llo_original>
// kernel: tpu_custom_call.1
$region0: #{tpu_custom_call.1}
  #allocation0 [shape = 'u32[]', space=smem, size = 0x4, offset = 0x4, fixed_abs, tag = 'smem constant byte address 0x4 - core index']
  #allocation1 [shape = 'u32[144,128]{1,0:T(1,128)}', space=vmem, size = 0x12000, scoped, tag = 'internal scratch']
  %s0 = inlined_call_operand.hbm [shape: f32[8,128], index: 0, kind: input, shape index: {}]
  %s1 = inlined_call_operand.hbm [shape: f32[128,128], index: 1, kind: input, shape index: {}]
  %s2 = inlined_call_operand.vmem [shape: f32[1,128], index: 2, kind: input, shape index: {}]
  %s3 = inlined_call_operand.hbm [shape: f32[8,128], index: 3, kind: output, shape index: {}]
  %s4 = sld [smem:[#allocation0]]
  $region30: #{tpu_custom_call.1} parent=0
    _
  %s6 = ssub.s32 1, %s4
  %s7 = scalar_select 0, %s6, %s4
  $region1: #{tpu_custom_call.1} parent=0
    #allocation2 [shape = 'u8[4096]{0}', space=vmem, size = 0x1000, scoped, tag = 'input window, operand 0, single buffered']
    #allocation3 [shape = 's32[1]{0}', space=sflag, size = 0x4, scoped, tag = 'scoped memory for tpu_custom_call.1']
    #allocation4 [shape = 's32[1]{0}', space=sflag, size = 0x4, scoped, tag = 'scoped memory for tpu_custom_call.1']
    #allocation5 [shape = 'u8[65536]{0}', space=vmem, size = 0x10000, scoped, tag = 'input window, operand 1, single buffered']
    #allocation6 [shape = 's32[1]{0}', space=sflag, size = 0x4, scoped, tag = 'scoped memory for tpu_custom_call.1']
    #allocation7 [shape = 'u8[4096]{0}', space=vmem, size = 0x1000, scoped, tag = 'output window, operand 0, single buffered']
    %8 = vsyncpa [#allocation3], 0
    %9 = vsyncpa [#allocation6], 0
    %10 = vsyncpa [#allocation4], 0
    // Predicated region
    $region2: #{tpu_custom_call.1} parent=1 // pred_check
      _
    $region3: #{tpu_custom_call.1} parent=1 // pred_check_branch
      %12 = sbr.rel (0) target = $region5
    $region4: #{tpu_custom_call.1} parent=1 // pred_region
      %s14 = ssub.s32 128, 128
      %15 = vsyncadd [#allocation3], %s14
      %s17 = sshll.u32 [#allocation2], 4
      %s18 = int_to_ptr.vmem [resolvable:$true] %s17
      %20 = dma.hbm_to_vmem [thread:$0]  %s0, 128, %s18, [#allocation3]
    $region5: #{tpu_custom_call.1} parent=1 // pred_fallthru
      _
    // Predicated region
    $region6: #{tpu_custom_call.1} parent=1 // pred_check
      _
    $region7: #{tpu_custom_call.1} parent=1 // pred_check_branch
      %22 = sbr.rel (0) target = $region9
    $region8: #{tpu_custom_call.1} parent=1 // pred_region
      %s24 = ssub.s32 2048, 2048
      %25 = vsyncadd [#allocation6], %s24
      %s26 = sshll.u32 [#allocation5], 4
      %s27 = int_to_ptr.vmem [resolvable:$true] %s26
      %32 = dma.hbm_to_vmem [thread:$0]  %s1, 2048, %s27, [#allocation6], 128, 128, 8
    $region9: #{tpu_custom_call.1} parent=1 // pred_fallthru
      _
    // Predicated region
    $region10: #{tpu_custom_call.1} parent=1 // pred_check
      _
    $region11: #{tpu_custom_call.1} parent=1 // pred_check_branch
      %34 = sbr.rel (0) target = $region13
    $region12: #{tpu_custom_call.1} parent=1 // pred_region
      _
    $region13: #{tpu_custom_call.1} parent=1 // pred_fallthru
      _
    // Predicated region
    $region14: #{tpu_custom_call.1} parent=1 // pred_check
      _
    $region15: #{tpu_custom_call.1} parent=1 // pred_check_branch
      %36 = sbr.rel (0) target = $region17
    $region16: #{tpu_custom_call.1} parent=1 // pred_region
      %37 = dma.done [#allocation3], 128
    $region17: #{tpu_custom_call.1} parent=1 // pred_fallthru
      _
    // Predicated region
    $region18: #{tpu_custom_call.1} parent=1 // pred_check
      _
    $region19: #{tpu_custom_call.1} parent=1 // pred_check_branch
      %39 = sbr.rel (0) target = $region21
    $region20: #{tpu_custom_call.1} parent=1 // pred_region
      %40 = dma.done [#allocation6], 2048
    $region21: #{tpu_custom_call.1} parent=1 // pred_fallthru
      _
    %v41 = vld [vmem:[#allocation2] sm:$0xff]
    %v42 = vld [vmem:[#allocation5] sm:$0xff]
    %v43 = vld [vmem:[#allocation5 + $0x8] sm:$0xff]
    %v44 = vld [vmem:[#allocation5 + $0x10] sm:$0xff]
    %v45 = vld [vmem:[#allocation5 + $0x18] sm:$0xff]
    %v46 = vld [vmem:[#allocation5 + $0x20] sm:$0xff]
    %v47 = vld [vmem:[#allocation5 + $0x28] sm:$0xff]
    %v48 = vld [vmem:[#allocation5 + $0x30] sm:$0xff]
    %v49 = vld [vmem:[#allocation5 + $0x38] sm:$0xff]
    %v50 = vld [vmem:[#allocation5 + $0x40] sm:$0xff]
    %v51 = vld [vmem:[#allocation5 + $0x48] sm:$0xff]
    %v52 = vld [vmem:[#allocation5 + $0x50] sm:$0xff]
    %v53 = vld [vmem:[#allocation5 + $0x58] sm:$0xff]
    %v54 = vld [vmem:[#allocation5 + $0x60] sm:$0xff]
    %v55 = vld [vmem:[#allocation5 + $0x68] sm:$0xff]
    %v56 = vld [vmem:[#allocation5 + $0x70] sm:$0xff]
    %v57 = vld [vmem:[#allocation5 + $0x78] sm:$0xff]
    %v58 = vld [vmem:[%s2] sm:$0x1]
    %v60 = vlaneseq
    %v61 = vshrl.u32 %v60, 7
    %v62 = vsub.s32 0, %v61
    %v63 = vrot.slane %v58, %v62
    %65 = vmatprep.subr.mxu0 0.0
    %66 = vmatpush1.msra.mxu0 %v42
    %67 = vmatprep.subr.mxu0 0.0
    %68 = vmatpush1.msra.mxu0 %v43
    %69 = vmatprep.subr.mxu0 0.0
    %70 = vmatpush1.msra.mxu0 %v44
    %71 = vmatprep.subr.mxu0 0.0
    %72 = vmatpush1.msra.mxu0 %v45
    %73 = vmatprep.subr.mxu0 0.0
    %74 = vmatpush1.msra.mxu0 %v46
    %75 = vmatprep.subr.mxu0 0.0
    %76 = vmatpush1.msra.mxu0 %v47
    %77 = vmatprep.subr.mxu0 0.0
    %78 = vmatpush1.msra.mxu0 %v48
    %79 = vmatprep.subr.mxu0 0.0
    %80 = vmatpush1.msra.mxu0 %v49
    %81 = vmatprep.subr.mxu0 0.0
    %82 = vmatpush1.msra.mxu0 %v50
    %83 = vmatprep.subr.mxu0 0.0
    %84 = vmatpush1.msra.mxu0 %v51
    %85 = vmatprep.subr.mxu0 0.0
    %86 = vmatpush1.msra.mxu0 %v52
    %87 = vmatprep.subr.mxu0 0.0
    %88 = vmatpush1.msra.mxu0 %v53
    %89 = vmatprep.subr.mxu0 0.0
    %90 = vmatpush1.msra.mxu0 %v54
    %91 = vmatprep.subr.mxu0 0.0
    %92 = vmatpush1.msra.mxu0 %v55
    %93 = vmatprep.subr.mxu0 0.0
    %94 = vmatpush1.msra.mxu0 %v56
    %95 = vmatprep.subr.mxu0 0.0
    %96 = vmatpush1.msra.mxu0 %v57
    %97 = vmatprep.subr.mxu0 0.0
    %98 = vmatpush1.msra.mxu0 0.0
    %99 = vmatprep.subr.mxu0 0.0
    %100 = vmatpush1.msra.mxu0 0.0
    %101 = vmatprep.subr.mxu0 0.0
    %102 = vmatpush1.msra.mxu0 0.0
    %103 = vmatprep.subr.mxu0 0.0
    %104 = vmatpush1.msra.mxu0 0.0
    %105 = vmatprep.subr.mxu0 0.0
    %106 = vmatpush1.msra.mxu0 0.0
    %107 = vmatprep.subr.mxu0 0.0
    %108 = vmatpush1.msra.mxu0 0.0
    %109 = vmatprep.subr.mxu0 0.0
    %110 = vmatpush1.msra.mxu0 0.0
    %111 = vmatprep.subr.mxu0 0.0
    %112 = vmatpush1.msra.mxu0 0.0
    %113 = vmatprep.subr.mxu0 0.0
    %114 = vmatpush1.msra.mxu0 0.0
    %115 = vmatprep.subr.mxu0 0.0
    %116 = vmatpush1.msra.mxu0 0.0
    %117 = vmatprep.subr.mxu0 0.0
    %118 = vmatpush1.msra.mxu0 0.0
    %119 = vmatprep.subr.mxu0 0.0
    %120 = vmatpush1.msra.mxu0 0.0
    %121 = vmatprep.subr.mxu0 0.0
    %122 = vmatpush1.msra.mxu0 0.0
    %123 = vmatprep.subr.mxu0 0.0
    %124 = vmatpush1.msra.mxu0 0.0
    %125 = vmatprep.subr.mxu0 0.0
    %126 = vmatpush1.msra.mxu0 0.0
    %127 = vmatprep.subr.mxu0 0.0
    %128 = vmatpush1.msra.mxu0 0.0
    %129 = vmatprep.mubr.f32.mxu0 0.0
    %130 = vmatmul.mubr.f32.gmra.mrb[0].mxu0 %v41
    %v131 = vpop.f32.mrb[0].mxu0
    %v132 = vadd.f32 %v63, %v131
    %v133 = vpop.f32.mrb[0].mxu0
    %134 = vdwg.mxu0
    %135 = vst [vmem:[#allocation7] sm:$0xff] %v132
    // Predicated region
    $region22: #{tpu_custom_call.1} parent=1 // pred_check
      _
    $region23: #{tpu_custom_call.1} parent=1 // pred_check_branch
      %137 = sbr.rel (0) target = $region25
    $region24: #{tpu_custom_call.1} parent=1 // pred_region
      %s139 = ssub.s32 128, 128
      %140 = vsyncadd [#allocation4], %s139
      %s142 = sshll.u32 [#allocation7], 4
      %s143 = int_to_ptr.vmem [resolvable:$true] %s142
      %145 = dma.vmem_to_hbm [thread:$0]  %s143, 128, %s3, [#allocation4]
    $region25: #{tpu_custom_call.1} parent=1 // pred_fallthru
      _
    // Predicated region
    $region26: #{tpu_custom_call.1} parent=1 // pred_check
      _
    $region27: #{tpu_custom_call.1} parent=1 // pred_check_branch
      %147 = sbr.rel (0) target = $region29
    $region28: #{tpu_custom_call.1} parent=1 // pred_region
      %148 = dma.done [#allocation4], 128
    $region29: #{tpu_custom_call.1} parent=1 // pred_fallthru
      _
    %149 = vsyncpa [#allocation3], 1
    %150 = vsyncpa [#allocation6], 1
    %151 = vsyncpa [#allocation4], 1

</llo_original>
